<compile_context>
chip_gen: v7x
topology: tpu7x:2x2x1
jax: 0.10.0
libtpu: 0.0.40
codegen_flags: <defaults>
</compile_context>

<pallas_src>
import jax
import jax.numpy as jnp
from jax import lax
from jax.experimental import pallas as pl
from jax.experimental.pallas import tpu as pltpu

# ----------------------------- config (small) -------------------------------
B = 2                 # batch
C_IN = 3              # image channels
H = W = 16            # spatial
HW = H * W
HIDDEN = 32           # cfg.MODEL.RSparseRCNN.HIDDEN_DIM
NUM_PROPOSALS = 8     # cfg.MODEL.RSparseRCNN.NUM_PROPOSALS
NUM_CLASSES = 4       # cfg.MODEL.RSparseRCNN.NUM_CLASSES
NUM_HEADS = 2         # cfg.MODEL.RSparseRCNN.NUM_HEADS
BN = B * NUM_PROPOSALS
KR = NUM_CLASSES + 5  # fused cls||reg head output width
OUT_LANES = 128       # lane-dense output slab width

_VMEM = pl.BlockSpec(memory_space=pltpu.MemorySpace.VMEM)   # whole array in VMEM
_TRANS_B = (((1,), (1,)), ((), ()))                         # A @ B^T on the MXU

# state-slab row layout (width = HIDDEN)
_ROW_FEAT = 0                       # [0, BN)        init proposal features (tiled over B)
_ROW_BG = BN                        # [BN, 2BN)      init proposal bg features (tiled over B)
_ROW_BOX = 2 * BN                   # [2BN, 3BN)     scaled initial boxes (cols 0..5)
_ROW_BB = 3 * BN                    # [3BN, 3BN+H)   folded backbone conv: cols 0..3 = W', col 3 = b'
_STATE_ROWS = 3 * BN + HIDDEN


# --------------------------- single fused kernel -----------------------------
def _fused_forward_kernel(
    img_ref,    # (C_IN, B*HW)                      raw images, lane axis = B*HW
    pool_ref,   # (B*N, B*HW)                       block-diag avg-pool matrix (1/HW folded)
    state_ref,  # (_STATE_ROWS, HIDDEN)             packed features/boxes/backbone params
    head_ref,   # (NUM_HEADS, HIDDEN+1, HIDDEN+KR)  packed per-stage head weights+biases
    out_ref,    # (B*N, 128)                        lane-dense output slab
):
    f32 = jnp.float32
    state = state_ref[...]
    prop_feat = state[_ROW_FEAT:_ROW_FEAT + BN, :]            # (B*N, HIDDEN)
    bg = state[_ROW_BG:_ROW_BG + BN, :]                       # (B*N, HIDDEN)
    boxes = state[_ROW_BOX:_ROW_BOX + BN, 0:5]                # (B*N, 5), already whwhwh-scaled
    bb_w = state[_ROW_BB:_ROW_BB + HIDDEN, 0:C_IN]            # (HIDDEN, C_IN), mean/std folded
    bb_b = state[_ROW_BB:_ROW_BB + HIDDEN, C_IN:C_IN + 1]     # (HIDDEN, 1)

    # ---- backbone stand-in, whole batch in one matmul, lane-dense (HIDDEN, B*HW) ----
    y = jnp.dot(bb_w, img_ref[...], preferred_element_type=f32) + bb_b
    y = jnp.maximum(y, 0.0)
    # per-image global average pool as one trans-B matmul:
    # (B*N, B*HW) x (HIDDEN, B*HW)^T -> (B*N, HIDDEN); 1/HW already in pool_ref.
    pooled = lax.dot_general(pool_ref[...], y, _TRANS_B,
                             preferred_element_type=f32)

    # ---- iterative head: unrolled, batch collapsed, fused cls||reg matmul ----
    head = head_ref[...]
    logits = None
    for s in range(NUM_HEADS):                                # static unroll
        w1 = head[s, 0:HIDDEN, 0:HIDDEN]
        b1 = head[s, HIDDEN:HIDDEN + 1, 0:HIDDEN]
        wcr = head[s, 0:HIDDEN, HIDDEN:HIDDEN + KR]
        bcr = head[s, HIDDEN:HIDDEN + 1, HIDDEN:HIDDEN + KR]
        q = (prop_feat + bg) * pooled
        h = jnp.maximum(jnp.dot(q, w1, preferred_element_type=f32) + b1, 0.0)
        cr = jnp.dot(h, wcr, preferred_element_type=f32) + bcr   # (B*N, K+5)
        logits = cr[:, 0:NUM_CLASSES]
        # TODO(synk): real RCNNHead applies a rotated-box delta transform
        # (apply_deltas, log-space w/h); additive update is the stand-in here.
        boxes = boxes + cr[:, NUM_CLASSES:NUM_CLASSES + 5]
        prop_feat = h

    scores = jax.nn.sigmoid(logits)                            # use_focal=True path

    # ---- one unmasked, lane-dense store: [logits|pad|boxes|pad|scores|pad] ----
    zc = jnp.zeros((BN, 8 - NUM_CLASSES), f32)
    zb = jnp.zeros((BN, 3), f32)
    zs = jnp.zeros((BN, OUT_LANES - 16 - NUM_CLASSES), f32)
    out_ref[...] = jnp.concatenate([logits, zc, boxes, zb, scores, zs], axis=1)


# --------------------------- parameter packing -------------------------------
def pack_params(params, image_size=(H, W)):
    """Trace-time constant folding + packing into a few VMEM slabs."""
    h_img, w_img = image_size
    f32 = jnp.float32

    # fold pixel normalization into the backbone 1x1-conv.
    inv_std = (1.0 / params["pixel_std"]).reshape(1, C_IN)            # (1, C_IN)
    bb_w = params["bb_wT"] * inv_std                                  # (HIDDEN, C_IN)
    bb_b = params["bb_b"] - jnp.dot(bb_w, params["pixel_mean"])       # (HIDDEN, 1)
    bb_block = jnp.zeros((HIDDEN, HIDDEN), f32)
    bb_block = bb_block.at[:, 0:C_IN].set(bb_w)
    bb_block = bb_block.at[:, C_IN:C_IN + 1].set(bb_b)

    # proposal boxes scaled by per-image (w, h, w, h, 180) -- constant here.
    whwhwh = jnp.array([float(w_img), float(h_img), float(w_img),
                        float(h_img), 180.0], f32)
    boxes0 = jnp.tile(params["init_boxes"] * whwhwh[None, :], (B, 1))  # (B*N, 5)
    boxes0_pad = jnp.zeros((BN, HIDDEN), f32).at[:, 0:5].set(boxes0)

    feat_bn = jnp.tile(params["init_prop_feat"], (B, 1))               # (B*N, HIDDEN)
    bg_bn = jnp.tile(params["init_prop_bg_feat"], (B, 1))              # (B*N, HIDDEN)

    state_slab = jnp.concatenate([feat_bn, bg_bn, boxes0_pad, bb_block], axis=0)

    # per-stage head weights: [w1 | wc | wr] on top, [b1 | bc | br] as last row.
    top = jnp.concatenate([params["w1"], params["wc"], params["wr"]], axis=2)
    bot = jnp.concatenate([params["b1"], params["bc"], params["br"]], axis=2)
    head_slab = jnp.concatenate([top, bot], axis=1)       # (NUM_HEADS, HIDDEN+1, HIDDEN+KR)

    # block-diagonal average-pool matrix with 1/HW folded in.
    pool_mat = jnp.kron(jnp.eye(B, dtype=f32),
                        jnp.full((NUM_PROPOSALS, HW), 1.0 / HW, f32))  # (B*N, B*HW)

    return {"state_slab": state_slab, "head_slab": head_slab, "pool_mat": pool_mat}


# ------------------------------ full forward --------------------------------
def rsparse_rcnn_forward(images, packed):
    # preprocess_image: normalization is folded into backbone weights; padding
    # skipped (all images already the same size).
    imgs = images.astype(jnp.float32).transpose(1, 0, 2, 3).reshape(C_IN, B * HW)

    out = pl.pallas_call(
        _fused_forward_kernel,
        out_shape=jax.ShapeDtypeStruct((BN, OUT_LANES), jnp.float32),
        in_specs=[_VMEM, _VMEM, _VMEM, _VMEM],
        out_specs=_VMEM,
    )(imgs, packed["pool_mat"], packed["state_slab"], packed["head_slab"])

    box_cls = out[:, 0:NUM_CLASSES].reshape(B, NUM_PROPOSALS, NUM_CLASSES)
    box_pred = out[:, 8:13].reshape(B, NUM_PROPOSALS, 5)
    scores = out[:, 16:16 + NUM_CLASSES].reshape(B, NUM_PROPOSALS, NUM_CLASSES)

    # inference (use_focal=True): per-image flat top-k over sigmoid scores,
    # fully batched.
    flat = scores.reshape(B, NUM_PROPOSALS * NUM_CLASSES)
    topv, topi = lax.top_k(flat, NUM_PROPOSALS)                       # (B, N)
    labels = topi % NUM_CLASSES                                       # (B, N)
    prop_idx = topi // NUM_CLASSES                                    # proposal index
    boxes_sel = jnp.take_along_axis(box_pred, prop_idx[..., None], axis=1)

    results = [{"scores": topv[i], "pred_classes": labels[i],
                "pred_boxes": boxes_sel[i]} for i in range(B)]
    return results, box_cls, box_pred


# ------------------------------ parameter init ------------------------------
def make_params(key):
    ks = jax.random.split(key, 6)
    p = {}
    p["pixel_mean"] = jnp.array([103.53, 116.28, 123.675],
                                jnp.float32).reshape(C_IN, 1)
    p["pixel_std"] = jnp.array([57.375, 57.12, 58.395],
                               jnp.float32).reshape(C_IN, 1)
    # nn.Embedding default init ~ N(0, 1)
    p["init_prop_feat"] = jax.random.normal(ks[0], (NUM_PROPOSALS, HIDDEN),
                                            jnp.float32)
    p["init_prop_bg_feat"] = jax.random.normal(ks[1], (NUM_PROPOSALS, HIDDEN),
                                               jnp.float32)
    # init_proposal_boxes constants: (cx, cy, w, h, a) = (.5, .5, .25, .5, .25)
    p["init_boxes"] = jnp.tile(
        jnp.array([[0.5, 0.5, 0.25, 0.5, 0.25]], jnp.float32),
        (NUM_PROPOSALS, 1))
    # backbone stand-in 1x1 conv, stored pre-transposed as (HIDDEN, C_IN)
    p["bb_wT"] = 0.1 * jax.random.normal(ks[2], (HIDDEN, C_IN), jnp.float32)
    p["bb_b"] = jnp.zeros((HIDDEN, 1), jnp.float32)
    # head weights stacked over stages
    p["w1"] = 0.05 * jax.random.normal(ks[3], (NUM_HEADS, HIDDEN, HIDDEN),
                                       jnp.float32)
    p["b1"] = jnp.zeros((NUM_HEADS, 1, HIDDEN), jnp.float32)
    p["wc"] = 0.05 * jax.random.normal(ks[4], (NUM_HEADS, HIDDEN, NUM_CLASSES),
                                       jnp.float32)
    p["bc"] = jnp.zeros((NUM_HEADS, 1, NUM_CLASSES), jnp.float32)
    p["wr"] = 0.05 * jax.random.normal(ks[5], (NUM_HEADS, HIDDEN, 5),
                                       jnp.float32)
    p["br"] = jnp.zeros((NUM_HEADS, 1, 5), jnp.float32)
    return p


if __name__ == "__main__":
    key = jax.random.PRNGKey(0)
    k_img, k_par = jax.random.split(key)
    # synthetic images, pixel-scale values, NCHW
    images = 50.0 * jax.random.normal(k_img, (B, C_IN, H, W), jnp.float32) + 110.0
    params = make_params(k_par)
    packed = pack_params(params)          # one-time folding/packing, outside jit

    fwd = jax.jit(rsparse_rcnn_forward)
    results, box_cls, box_pred = fwd(images, packed)
    jax.block_until_ready(box_cls)
    jax.block_until_ready(box_pred)
    for r in results:
        jax.block_until_ready(r["scores"])
        jax.block_until_ready(r["pred_boxes"])
        jax.block_until_ready(r["pred_classes"])

    assert box_cls.shape == (B, NUM_PROPOSALS, NUM_CLASSES)
    assert box_pred.shape == (B, NUM_PROPOSALS, 5)
    assert results[0]["pred_boxes"].shape == (NUM_PROPOSALS, 5)
    assert results[0]["scores"].shape == (NUM_PROPOSALS,)
    assert bool(jnp.all(jnp.isfinite(box_cls)))
    assert bool(jnp.all(jnp.isfinite(box_pred)))
    print("KERNEL_OK")
</pallas_src>

<mosaic_0001>
module attributes {stable_mosaic.version = 11 : i64} {
  func.func @_fused_forward_kernel(%arg0: memref<3x512xf32, #tpu.memory_space<vmem>>, %arg1: memref<16x512xf32, #tpu.memory_space<vmem>>, %arg2: memref<80x32xf32, #tpu.memory_space<vmem>>, %arg3: memref<2x33x41xf32, #tpu.memory_space<vmem>>, %arg4: memref<16x128xf32, #tpu.memory_space<vmem>>) attributes {dimension_semantics = [], scalar_prefetch = 0 : i64, scratch_operands = 0 : i64, tpu.core_type = #tpu.core_type<tc>} {
    %c0 = arith.constant 0 : index
    %c0_0 = arith.constant 0 : index
    %0 = vector.load %arg2[%c0, %c0_0] : memref<80x32xf32, #tpu.memory_space<vmem>>, vector<80x32xf32>
    %1 = vector.extract_strided_slice %0 {offsets = [0, 0], sizes = [16, 32], strides = [1, 1]} : vector<80x32xf32> to vector<16x32xf32>
    %2 = vector.extract_strided_slice %0 {offsets = [16, 0], sizes = [16, 32], strides = [1, 1]} : vector<80x32xf32> to vector<16x32xf32>
    %3 = vector.extract_strided_slice %0 {offsets = [32, 0], sizes = [16, 5], strides = [1, 1]} : vector<80x32xf32> to vector<16x5xf32>
    %4 = vector.extract_strided_slice %0 {offsets = [48, 0], sizes = [32, 3], strides = [1, 1]} : vector<80x32xf32> to vector<32x3xf32>
    %5 = vector.extract_strided_slice %0 {offsets = [48, 3], sizes = [32, 1], strides = [1, 1]} : vector<80x32xf32> to vector<32x1xf32>
    %c0_1 = arith.constant 0 : index
    %c0_2 = arith.constant 0 : index
    %6 = vector.load %arg0[%c0_1, %c0_2] : memref<3x512xf32, #tpu.memory_space<vmem>>, vector<3x512xf32>
    %cst = arith.constant dense<0.000000e+00> : vector<32x512xf32>
    %7 = tpu.matmul %4, %6, %cst {dimension_numbers = #tpu.dot_dimension_numbers<[1], [0], [0], [1], [0, 0, 1, 1], [], []>} : vector<32x3xf32>, vector<3x512xf32>, vector<32x512xf32> -> vector<32x512xf32>
    %8 = vector.broadcast %5 : vector<32x1xf32> to vector<32x512xf32>
    %9 = arith.addf %7, %8 : vector<32x512xf32>
    %cst_3 = arith.constant 0.000000e+00 : f32
    %10 = vector.broadcast %cst_3 : f32 to vector<32x512xf32>
    %11 = arith.maximumf %9, %10 : vector<32x512xf32>
    %c0_4 = arith.constant 0 : index
    %c0_5 = arith.constant 0 : index
    %12 = vector.load %arg1[%c0_4, %c0_5] : memref<16x512xf32, #tpu.memory_space<vmem>>, vector<16x512xf32>
    %cst_6 = arith.constant dense<0.000000e+00> : vector<16x32xf32>
    %13 = tpu.matmul %12, %11, %cst_6 {dimension_numbers = #tpu.dot_dimension_numbers<[1], [1], [0], [0], [0, 0, 1, 0], [], []>} : vector<16x512xf32>, vector<32x512xf32>, vector<16x32xf32> -> vector<16x32xf32>
    %c0_7 = arith.constant 0 : index
    %c0_8 = arith.constant 0 : index
    %c0_9 = arith.constant 0 : index
    %14 = vector.load %arg3[%c0_7, %c0_8, %c0_9] : memref<2x33x41xf32, #tpu.memory_space<vmem>>, vector<2x33x41xf32>
    %15 = vector.extract_strided_slice %14 {offsets = [0, 0, 0], sizes = [1, 32, 32], strides = [1, 1, 1]} : vector<2x33x41xf32> to vector<1x32x32xf32>
    %16 = vector.shape_cast %15 : vector<1x32x32xf32> to vector<32x32xf32>
    %17 = vector.extract_strided_slice %14 {offsets = [0, 32, 0], sizes = [1, 1, 32], strides = [1, 1, 1]} : vector<2x33x41xf32> to vector<1x1x32xf32>
    %18 = vector.shape_cast %17 : vector<1x1x32xf32> to vector<1x32xf32>
    %19 = vector.extract_strided_slice %14 {offsets = [0, 0, 32], sizes = [1, 32, 9], strides = [1, 1, 1]} : vector<2x33x41xf32> to vector<1x32x9xf32>
    %20 = vector.shape_cast %19 : vector<1x32x9xf32> to vector<32x9xf32>
    %21 = vector.extract_strided_slice %14 {offsets = [0, 32, 32], sizes = [1, 1, 9], strides = [1, 1, 1]} : vector<2x33x41xf32> to vector<1x1x9xf32>
    %22 = vector.shape_cast %21 : vector<1x1x9xf32> to vector<1x9xf32>
    %23 = arith.addf %1, %2 : vector<16x32xf32>
    %24 = arith.mulf %23, %13 : vector<16x32xf32>
    %cst_10 = arith.constant dense<0.000000e+00> : vector<16x32xf32>
    %25 = tpu.matmul %24, %16, %cst_10 {dimension_numbers = #tpu.dot_dimension_numbers<[1], [0], [0], [1], [0, 0, 1, 1], [], []>} : vector<16x32xf32>, vector<32x32xf32>, vector<16x32xf32> -> vector<16x32xf32>
    %26 = vector.broadcast %18 : vector<1x32xf32> to vector<16x32xf32>
    %27 = arith.addf %25, %26 : vector<16x32xf32>
    %cst_11 = arith.constant 0.000000e+00 : f32
    %28 = vector.broadcast %cst_11 : f32 to vector<16x32xf32>
    %29 = arith.maximumf %27, %28 : vector<16x32xf32>
    %cst_12 = arith.constant dense<0.000000e+00> : vector<16x9xf32>
    %30 = tpu.matmul %29, %20, %cst_12 {dimension_numbers = #tpu.dot_dimension_numbers<[1], [0], [0], [1], [0, 0, 1, 1], [], []>} : vector<16x32xf32>, vector<32x9xf32>, vector<16x9xf32> -> vector<16x9xf32>
    %31 = vector.broadcast %22 : vector<1x9xf32> to vector<16x9xf32>
    %32 = arith.addf %30, %31 : vector<16x9xf32>
    %33 = vector.extract_strided_slice %32 {offsets = [0, 4], sizes = [16, 5], strides = [1, 1]} : vector<16x9xf32> to vector<16x5xf32>
    %34 = arith.addf %3, %33 : vector<16x5xf32>
    %35 = vector.extract_strided_slice %14 {offsets = [1, 0, 0], sizes = [1, 32, 32], strides = [1, 1, 1]} : vector<2x33x41xf32> to vector<1x32x32xf32>
    %36 = vector.shape_cast %35 : vector<1x32x32xf32> to vector<32x32xf32>
    %37 = vector.extract_strided_slice %14 {offsets = [1, 32, 0], sizes = [1, 1, 32], strides = [1, 1, 1]} : vector<2x33x41xf32> to vector<1x1x32xf32>
    %38 = vector.shape_cast %37 : vector<1x1x32xf32> to vector<1x32xf32>
    %39 = vector.extract_strided_slice %14 {offsets = [1, 0, 32], sizes = [1, 32, 9], strides = [1, 1, 1]} : vector<2x33x41xf32> to vector<1x32x9xf32>
    %40 = vector.shape_cast %39 : vector<1x32x9xf32> to vector<32x9xf32>
    %41 = vector.extract_strided_slice %14 {offsets = [1, 32, 32], sizes = [1, 1, 9], strides = [1, 1, 1]} : vector<2x33x41xf32> to vector<1x1x9xf32>
    %42 = vector.shape_cast %41 : vector<1x1x9xf32> to vector<1x9xf32>
    %43 = arith.addf %29, %2 : vector<16x32xf32>
    %44 = arith.mulf %43, %13 : vector<16x32xf32>
    %cst_13 = arith.constant dense<0.000000e+00> : vector<16x32xf32>
    %45 = tpu.matmul %44, %36, %cst_13 {dimension_numbers = #tpu.dot_dimension_numbers<[1], [0], [0], [1], [0, 0, 1, 1], [], []>} : vector<16x32xf32>, vector<32x32xf32>, vector<16x32xf32> -> vector<16x32xf32>
    %46 = vector.broadcast %38 : vector<1x32xf32> to vector<16x32xf32>
    %47 = arith.addf %45, %46 : vector<16x32xf32>
    %cst_14 = arith.constant 0.000000e+00 : f32
    %48 = vector.broadcast %cst_14 : f32 to vector<16x32xf32>
    %49 = arith.maximumf %47, %48 : vector<16x32xf32>
    %cst_15 = arith.constant dense<0.000000e+00> : vector<16x9xf32>
    %50 = tpu.matmul %49, %40, %cst_15 {dimension_numbers = #tpu.dot_dimension_numbers<[1], [0], [0], [1], [0, 0, 1, 1], [], []>} : vector<16x32xf32>, vector<32x9xf32>, vector<16x9xf32> -> vector<16x9xf32>
    %51 = vector.broadcast %42 : vector<1x9xf32> to vector<16x9xf32>
    %52 = arith.addf %50, %51 : vector<16x9xf32>
    %53 = vector.extract_strided_slice %52 {offsets = [0, 0], sizes = [16, 4], strides = [1, 1]} : vector<16x9xf32> to vector<16x4xf32>
    %54 = vector.extract_strided_slice %52 {offsets = [0, 4], sizes = [16, 5], strides = [1, 1]} : vector<16x9xf32> to vector<16x5xf32>
    %55 = arith.addf %34, %54 : vector<16x5xf32>
    %56 = arith.negf %53 : vector<16x4xf32>
    %57 = math.exp %56 : vector<16x4xf32>
    %cst_16 = arith.constant 1.000000e+00 : f32
    %58 = vector.broadcast %cst_16 : f32 to vector<16x4xf32>
    %59 = arith.addf %58, %57 : vector<16x4xf32>
    %60 = arith.divf %58, %59 : vector<16x4xf32>
    %cst_17 = arith.constant 0.000000e+00 : f32
    %61 = vector.broadcast %cst_17 : f32 to vector<16x4xf32>
    %cst_18 = arith.constant 0.000000e+00 : f32
    %62 = vector.broadcast %cst_18 : f32 to vector<16x3xf32>
    %cst_19 = arith.constant 0.000000e+00 : f32
    %63 = vector.broadcast %cst_19 : f32 to vector<16x108xf32>
    %64 = tpu.concatenate %53, %61, %55, %62, %60, %63 in 1 : vector<16x4xf32>, vector<16x4xf32>, vector<16x5xf32>, vector<16x3xf32>, vector<16x4xf32>, vector<16x108xf32> -> vector<16x128xf32>
    %c0_20 = arith.constant 0 : index
    %c0_21 = arith.constant 0 : index
    %65 = vector.load %arg4[%c0_20, %c0_21] : memref<16x128xf32, #tpu.memory_space<vmem>>, vector<16x128xf32>
    tpu.vector_store %arg4[%c0_20, %c0_21], %64 {strides = array<i32>} : memref<16x128xf32, #tpu.memory_space<vmem>>, vector<16x128xf32>,
    return
  }
}

</mosaic_0001>

<llo_original>
// kernel: rsparse_rcnn_forward.1
$region0: #{rsparse_rcnn_forward.1}
  #allocation0 [shape = 'u32[]', space=smem, size = 0x4, offset = 0x4, fixed_abs, tag = 'smem constant byte address 0x4 - core index']
  #allocation1 [shape = 'u32[144,128]{1,0:T(1,128)}', space=vmem, size = 0x12000, scoped, tag = 'internal scratch']
  %s0 = inlined_call_operand.vmem [shape: f32[3,512], index: 0, kind: input, shape index: {}]
  %s1 = inlined_call_operand.vmem [shape: f32[16,512], index: 1, kind: input, shape index: {}]
  %s2 = inlined_call_operand.vmem [shape: f32[80,32], index: 2, kind: input, shape index: {}]
  %s3 = inlined_call_operand.vmem [shape: f32[2,33,41], index: 3, kind: input, shape index: {}]
  %s4 = inlined_call_operand.vmem [shape: f32[16,128], index: 4, kind: output, shape index: {}]
  %s5 = sld [smem:[#allocation0]]
  $region26: #{rsparse_rcnn_forward.1} parent=0
    _
  %s7 = ssub.s32 1, %s5
  %s8 = scalar_select 0, %s7, %s5
  // Predicated region
  $region2: #{rsparse_rcnn_forward.1} parent=0 // pred_check
    _
  $region3: #{rsparse_rcnn_forward.1} parent=0 // pred_check_branch
    %10 = sbr.rel (0) target = $region5
  $region4: #{rsparse_rcnn_forward.1} parent=0 // pred_region
    _
  $region5: #{rsparse_rcnn_forward.1} parent=0 // pred_fallthru
    _
  // Predicated region
  $region6: #{rsparse_rcnn_forward.1} parent=0 // pred_check
    _
  $region7: #{rsparse_rcnn_forward.1} parent=0 // pred_check_branch
    %12 = sbr.rel (0) target = $region9
  $region8: #{rsparse_rcnn_forward.1} parent=0 // pred_region
    _
  $region9: #{rsparse_rcnn_forward.1} parent=0 // pred_fallthru
    _
  // Predicated region
  $region10: #{rsparse_rcnn_forward.1} parent=0 // pred_check
    _
  $region11: #{rsparse_rcnn_forward.1} parent=0 // pred_check_branch
    %14 = sbr.rel (0) target = $region13
  $region12: #{rsparse_rcnn_forward.1} parent=0 // pred_region
    _
  $region13: #{rsparse_rcnn_forward.1} parent=0 // pred_fallthru
    _
  // Predicated region
  $region14: #{rsparse_rcnn_forward.1} parent=0 // pred_check
    _
  $region15: #{rsparse_rcnn_forward.1} parent=0 // pred_check_branch
    %16 = sbr.rel (0) target = $region17
  $region16: #{rsparse_rcnn_forward.1} parent=0 // pred_region
    _
  $region17: #{rsparse_rcnn_forward.1} parent=0 // pred_fallthru
    _
  %v17 = vld [vmem:[%s2] sm:$0xff]
  %v18 = vld [vmem:[%s2 + $0x8] sm:$0xff]
  %v19 = vld [vmem:[%s2 + $0x10] sm:$0xff]
  %v20 = vld [vmem:[%s2 + $0x18] sm:$0xff]
  %v21 = vld [vmem:[%s2 + $0x20] sm:$0xff]
  %v22 = vld [vmem:[%s2 + $0x28] sm:$0xff]
  %v23 = vld [vmem:[%s2 + $0x30] sm:$0xff]
  %v24 = vld [vmem:[%s2 + $0x38] sm:$0xff]
  %v25 = vld [vmem:[%s2 + $0x40] sm:$0xff]
  %v26 = vld [vmem:[%s2 + $0x48] sm:$0xff]
  %v27 = vld [vmem:[%s0] sm:$0x77]
  %v28 = vld [vmem:[%s0 + $0x8] sm:$0x77]
  %30 = vset.pattern.permute.xlu0 3
  %31 = vperm.xlu0 %30, %v23
  %v32 = vpop.permute.xlu0 %31
  %35 = vset.pattern.permute.xlu0 3
  %36 = vperm.xlu0 %35, %v24
  %v37 = vpop.permute.xlu0 %36
  %40 = vset.pattern.permute.xlu0 3
  %41 = vperm.xlu0 %40, %v25
  %v42 = vpop.permute.xlu0 %41
  %45 = vset.pattern.permute.xlu0 3
  %46 = vperm.xlu0 %45, %v26
  %v47 = vpop.permute.xlu0 %46
  %v51 = vcombine.high %v27, %v27
  %v52 = vcombine.high %v28, %v28
  %vm53 = vcmask 23552
  %v54 = vsel %vm53, %v23, 0
  %v56 = vsel %vm53, %v24, 0
  %v58 = vsel %vm53, %v25, 0
  %v60 = vsel %vm53, %v26, 0
  %vm62 = vcmask 1042432
  %v63 = vsel %vm62, %v27, 0
  %v65 = vsel %vm62, %v51, 0
  %v67 = vsel %vm62, %v28, 0
  %v69 = vsel %vm62, %v52, 0
  %71 = vmatprep.subr.mxu0 %v65
  %72 = vmatpush1.msra.mxu0 %v63
  %73 = vmatprep.subr.mxu0 0.0
  %74 = vmatpush1.msra.mxu0 0.0
  %75 = vmatprep.subr.mxu0 0.0
  %76 = vmatpush1.msra.mxu0 0.0
  %77 = vmatprep.subr.mxu0 0.0
  %78 = vmatpush1.msra.mxu0 0.0
  %79 = vmatprep.subr.mxu0 0.0
  %80 = vmatpush1.msra.mxu0 0.0
  %81 = vmatprep.subr.mxu0 0.0
  %82 = vmatpush1.msra.mxu0 0.0
  %83 = vmatprep.subr.mxu0 0.0
  %84 = vmatpush1.msra.mxu0 0.0
  %85 = vmatprep.subr.mxu0 0.0
  %86 = vmatpush1.msra.mxu0 0.0
  %87 = vmatprep.subr.mxu0 0.0
  %88 = vmatpush1.msra.mxu0 0.0
  %89 = vmatprep.subr.mxu0 0.0
  %90 = vmatpush1.msra.mxu0 0.0
  %91 = vmatprep.subr.mxu0 0.0
  %92 = vmatpush1.msra.mxu0 0.0
  %93 = vmatprep.subr.mxu0 0.0
  %94 = vmatpush1.msra.mxu0 0.0
  %95 = vmatprep.subr.mxu0 0.0
  %96 = vmatpush1.msra.mxu0 0.0
  %97 = vmatprep.subr.mxu0 0.0
  %98 = vmatpush1.msra.mxu0 0.0
  %99 = vmatprep.subr.mxu0 0.0
  %100 = vmatpush1.msra.mxu0 0.0
  %101 = vmatprep.subr.mxu0 0.0
  %102 = vmatpush1.msra.mxu0 0.0
  %103 = vmatprep.subr.mxu0 0.0
  %104 = vmatpush1.msra.mxu0 0.0
  %105 = vmatprep.subr.mxu0 0.0
  %106 = vmatpush1.msra.mxu0 0.0
  %107 = vmatprep.subr.mxu0 0.0
  %108 = vmatpush1.msra.mxu0 0.0
  %109 = vmatprep.subr.mxu0 0.0
  %110 = vmatpush1.msra.mxu0 0.0
  %111 = vmatprep.subr.mxu0 0.0
  %112 = vmatpush1.msra.mxu0 0.0
  %113 = vmatprep.subr.mxu0 0.0
  %114 = vmatpush1.msra.mxu0 0.0
  %115 = vmatprep.subr.mxu0 0.0
  %116 = vmatpush1.msra.mxu0 0.0
  %117 = vmatprep.subr.mxu0 0.0
  %118 = vmatpush1.msra.mxu0 0.0
  %119 = vmatprep.subr.mxu0 0.0
  %120 = vmatpush1.msra.mxu0 0.0
  %121 = vmatprep.subr.mxu0 0.0
  %122 = vmatpush1.msra.mxu0 0.0
  %123 = vmatprep.subr.mxu0 0.0
  %124 = vmatpush1.msra.mxu0 0.0
  %125 = vmatprep.subr.mxu0 0.0
  %126 = vmatpush1.msra.mxu0 0.0
  %127 = vmatprep.subr.mxu0 0.0
  %128 = vmatpush1.msra.mxu0 0.0
  %129 = vmatprep.subr.mxu0 0.0
  %130 = vmatpush1.msra.mxu0 0.0
  %131 = vmatprep.subr.mxu0 0.0
  %132 = vmatpush1.msra.mxu0 0.0
  %133 = vmatprep.subr.mxu0 0.0
  %134 = vmatpush1.msra.mxu0 0.0
  %135 = vmatprep.mubr.f32.mxu0 0.0
  %136 = vmatmul.mubr.f32.gmra.mrb[0].mxu0 %v54
  %v137 = vpop.f32.mrb[0].mxu0
  %v138 = vadd.f32 %v32, %v137
  %v139 = vpop.f32.mrb[0].mxu0
  %v140 = vadd.f32 %v32, %v139
  %141 = vmatprep.mubr.f32.mxu0 0.0
  %142 = vmatmul.mubr.f32.gmra.mrb[0].mxu0 %v56
  %v143 = vpop.f32.mrb[0].mxu0
  %v144 = vadd.f32 %v37, %v143
  %v145 = vpop.f32.mrb[0].mxu0
  %v146 = vadd.f32 %v37, %v145
  %147 = vmatprep.mubr.f32.mxu0 0.0
  %148 = vmatmul.mubr.f32.gmra.mrb[0].mxu0 %v58
  %v149 = vpop.f32.mrb[0].mxu0
  %v150 = vadd.f32 %v42, %v149
  %v151 = vpop.f32.mrb[0].mxu0
  %v152 = vadd.f32 %v42, %v151
  %153 = vmatprep.mubr.f32.mxu0 0.0
  %154 = vmatmul.mubr.f32.gmra.mrb[0].mxu0 %v60
  %v155 = vpop.f32.mrb[0].mxu0
  %v156 = vadd.f32 %v47, %v155
  %v157 = vpop.f32.mrb[0].mxu0
  %v158 = vadd.f32 %v47, %v157
  %159 = vdwg.mxu0
  %160 = vmatprep.subr.mxu0 %v69
  %161 = vmatpush1.msra.mxu0 %v67
  %162 = vmatprep.subr.mxu0 0.0
  %163 = vmatpush1.msra.mxu0 0.0
  %164 = vmatprep.subr.mxu0 0.0
  %165 = vmatpush1.msra.mxu0 0.0
  %166 = vmatprep.subr.mxu0 0.0
  %167 = vmatpush1.msra.mxu0 0.0
  %168 = vmatprep.subr.mxu0 0.0
  %169 = vmatpush1.msra.mxu0 0.0
  %170 = vmatprep.subr.mxu0 0.0
  %171 = vmatpush1.msra.mxu0 0.0
  %172 = vmatprep.subr.mxu0 0.0
  %173 = vmatpush1.msra.mxu0 0.0
  %174 = vmatprep.subr.mxu0 0.0
  %175 = vmatpush1.msra.mxu0 0.0
  %176 = vmatprep.subr.mxu0 0.0
  %177 = vmatpush1.msra.mxu0 0.0
  %178 = vmatprep.subr.mxu0 0.0
  %179 = vmatpush1.msra.mxu0 0.0
  %180 = vmatprep.subr.mxu0 0.0
  %181 = vmatpush1.msra.mxu0 0.0
  %182 = vmatprep.subr.mxu0 0.0
  %183 = vmatpush1.msra.mxu0 0.0
  %184 = vmatprep.subr.mxu0 0.0
  %185 = vmatpush1.msra.mxu0 0.0
  %186 = vmatprep.subr.mxu0 0.0
  %187 = vmatpush1.msra.mxu0 0.0
  %188 = vmatprep.subr.mxu0 0.0
  %189 = vmatpush1.msra.mxu0 0.0
  %190 = vmatprep.subr.mxu0 0.0
  %191 = vmatpush1.msra.mxu0 0.0
  %192 = vmatprep.subr.mxu0 0.0
  %193 = vmatpush1.msra.mxu0 0.0
  %194 = vmatprep.subr.mxu0 0.0
  %195 = vmatpush1.msra.mxu0 0.0
  %196 = vmatprep.subr.mxu0 0.0
  %197 = vmatpush1.msra.mxu0 0.0
  %198 = vmatprep.subr.mxu0 0.0
  %199 = vmatpush1.msra.mxu0 0.0
  %200 = vmatprep.subr.mxu0 0.0
  %201 = vmatpush1.msra.mxu0 0.0
  %202 = vmatprep.subr.mxu0 0.0
  %203 = vmatpush1.msra.mxu0 0.0
  %204 = vmatprep.subr.mxu0 0.0
  %205 = vmatpush1.msra.mxu0 0.0
  %206 = vmatprep.subr.mxu0 0.0
  %207 = vmatpush1.msra.mxu0 0.0
  %208 = vmatprep.subr.mxu0 0.0
  %209 = vmatpush1.msra.mxu0 0.0
  %210 = vmatprep.subr.mxu0 0.0
  %211 = vmatpush1.msra.mxu0 0.0
  %212 = vmatprep.subr.mxu0 0.0
  %213 = vmatpush1.msra.mxu0 0.0
  %214 = vmatprep.subr.mxu0 0.0
  %215 = vmatpush1.msra.mxu0 0.0
  %216 = vmatprep.subr.mxu0 0.0
  %217 = vmatpush1.msra.mxu0 0.0
  %218 = vmatprep.subr.mxu0 0.0
  %219 = vmatpush1.msra.mxu0 0.0
  %220 = vmatprep.subr.mxu0 0.0
  %221 = vmatpush1.msra.mxu0 0.0
  %222 = vmatprep.subr.mxu0 0.0
  %223 = vmatpush1.msra.mxu0 0.0
  %224 = vmatprep.mubr.f32.mxu0 0.0
  %225 = vmatmul.mubr.f32.gmra.mrb[0].mxu0 %v54
  %v226 = vpop.f32.mrb[0].mxu0
  %v227 = vadd.f32 %v32, %v226
  %v228 = vpop.f32.mrb[0].mxu0
  %v229 = vadd.f32 %v32, %v228
  %230 = vmatprep.mubr.f32.mxu0 0.0
  %231 = vmatmul.mubr.f32.gmra.mrb[0].mxu0 %v56
  %v232 = vpop.f32.mrb[0].mxu0
  %v233 = vadd.f32 %v37, %v232
  %v234 = vpop.f32.mrb[0].mxu0
  %v235 = vadd.f32 %v37, %v234
  %236 = vmatprep.mubr.f32.mxu0 0.0
  %237 = vmatmul.mubr.f32.gmra.mrb[0].mxu0 %v58
  %v238 = vpop.f32.mrb[0].mxu0
  %v239 = vadd.f32 %v42, %v238
  %v240 = vpop.f32.mrb[0].mxu0
  %v241 = vadd.f32 %v42, %v240
  %242 = vmatprep.mubr.f32.mxu0 0.0
  %243 = vmatmul.mubr.f32.gmra.mrb[0].mxu0 %v60
  %v244 = vpop.f32.mrb[0].mxu0
  %v245 = vadd.f32 %v47, %v244
  %v246 = vpop.f32.mrb[0].mxu0
  %v247 = vadd.f32 %v47, %v246
  %248 = vdwg.mxu0
  %v249 = vmax.f32 %v138, 0.0
  %v250 = vmax.f32 %v140, 0.0
  %v251 = vmax.f32 %v227, 0.0
  %v252 = vmax.f32 %v229, 0.0
  %v253 = vmax.f32 %v144, 0.0
  %v254 = vmax.f32 %v146, 0.0
  %v255 = vmax.f32 %v233, 0.0
  %v256 = vmax.f32 %v235, 0.0
  %v257 = vmax.f32 %v150, 0.0
  %v258 = vmax.f32 %v152, 0.0
  %v259 = vmax.f32 %v239, 0.0
  %v260 = vmax.f32 %v241, 0.0
  %v261 = vmax.f32 %v156, 0.0
  %v262 = vmax.f32 %v158, 0.0
  %v263 = vmax.f32 %v245, 0.0
  %v264 = vmax.f32 %v247, 0.0
  %v265 = vld [vmem:[%s1] sm:$0xff]
  %v266 = vld [vmem:[%s1 + $0x8] sm:$0xff]
  %v267 = vld [vmem:[%s1 + $0x10] sm:$0xff]
  %v268 = vld [vmem:[%s1 + $0x18] sm:$0xff]
  %v269 = vld [vmem:[%s1 + $0x20] sm:$0xff]
  %v270 = vld [vmem:[%s1 + $0x28] sm:$0xff]
  %v271 = vld [vmem:[%s1 + $0x30] sm:$0xff]
  %v272 = vld [vmem:[%s1 + $0x38] sm:$0xff]
  %273 = vmatprep.subr.mxu0 %v250
  %274 = vmatpush1.xpose.msra.mxu0 %v249
  %275 = vmatprep.subr.mxu0 %v254
  %276 = vmatpush1.xpose.msra.mxu0 %v253
  %277 = vmatprep.subr.mxu0 %v258
  %278 = vmatpush1.xpose.msra.mxu0 %v257
  %279 = vmatprep.subr.mxu0 %v262
  %280 = vmatpush1.xpose.msra.mxu0 %v261
  %281 = vmatprep.subr.mxu0 0.0
  %282 = vmatpush1.xpose.msra.mxu0 0.0
  %283 = vmatprep.subr.mxu0 0.0
  %284 = vmatpush1.xpose.msra.mxu0 0.0
  %285 = vmatprep.subr.mxu0 0.0
  %286 = vmatpush1.xpose.msra.mxu0 0.0
  %287 = vmatprep.subr.mxu0 0.0
  %288 = vmatpush1.xpose.msra.mxu0 0.0
  %289 = vmatprep.subr.mxu0 0.0
  %290 = vmatpush1.xpose.msra.mxu0 0.0
  %291 = vmatprep.subr.mxu0 0.0
  %292 = vmatpush1.xpose.msra.mxu0 0.0
  %293 = vmatprep.subr.mxu0 0.0
  %294 = vmatpush1.xpose.msra.mxu0 0.0
  %295 = vmatprep.subr.mxu0 0.0
  %296 = vmatpush1.xpose.msra.mxu0 0.0
  %297 = vmatprep.subr.mxu0 0.0
  %298 = vmatpush1.xpose.msra.mxu0 0.0
  %299 = vmatprep.subr.mxu0 0.0
  %300 = vmatpush1.xpose.msra.mxu0 0.0
  %301 = vmatprep.subr.mxu0 0.0
  %302 = vmatpush1.xpose.msra.mxu0 0.0
  %303 = vmatprep.subr.mxu0 0.0
  %304 = vmatpush1.xpose.msra.mxu0 0.0
  %305 = vmatprep.subr.mxu0 0.0
  %306 = vmatpush1.xpose.msra.mxu0 0.0
  %307 = vmatprep.subr.mxu0 0.0
  %308 = vmatpush1.xpose.msra.mxu0 0.0
  %309 = vmatprep.subr.mxu0 0.0
  %310 = vmatpush1.xpose.msra.mxu0 0.0
  %311 = vmatprep.subr.mxu0 0.0
  %312 = vmatpush1.xpose.msra.mxu0 0.0
  %313 = vmatprep.subr.mxu0 0.0
  %314 = vmatpush1.xpose.msra.mxu0 0.0
  %315 = vmatprep.subr.mxu0 0.0
  %316 = vmatpush1.xpose.msra.mxu0 0.0
  %317 = vmatprep.subr.mxu0 0.0
  %318 = vmatpush1.xpose.msra.mxu0 0.0
  %319 = vmatprep.subr.mxu0 0.0
  %320 = vmatpush1.xpose.msra.mxu0 0.0
  %321 = vmatprep.subr.mxu0 0.0
  %322 = vmatpush1.xpose.msra.mxu0 0.0
  %323 = vmatprep.subr.mxu0 0.0
  %324 = vmatpush1.xpose.msra.mxu0 0.0
  %325 = vmatprep.subr.mxu0 0.0
  %326 = vmatpush1.xpose.msra.mxu0 0.0
  %327 = vmatprep.subr.mxu0 0.0
  %328 = vmatpush1.xpose.msra.mxu0 0.0
  %329 = vmatprep.subr.mxu0 0.0
  %330 = vmatpush1.xpose.msra.mxu0 0.0
  %331 = vmatprep.subr.mxu0 0.0
  %332 = vmatpush1.xpose.msra.mxu0 0.0
  %333 = vmatprep.subr.mxu0 0.0
  %334 = vmatpush1.xpose.msra.mxu0 0.0
  %335 = vmatprep.subr.mxu0 0.0
  %336 = vmatpush1.xpose.msra.mxu0 0.0
  %337 = vmatprep.mubr.f32.mxu0 %v266
  %338 = vmatmul.mubr.f32.gmra.mrb[0].mxu0 %v265
  %v339 = vpop.f32.mrb[0].mxu0
  %v340 = vadd.f32 0.0, %v339
  %v341 = vpop.f32.mrb[0].mxu0
  %342 = vmatprep.mubr.f32.mxu0 %v270
  %343 = vmatmul.mubr.f32.gmra.mrb[0].mxu0 %v269
  %v344 = vpop.f32.mrb[0].mxu0
  %v345 = vadd.f32 0.0, %v344
  %v346 = vpop.f32.mrb[0].mxu0
  %347 = vdwg.mxu0
  %348 = vmatprep.subr.mxu0 %v252
  %349 = vmatpush1.xpose.msra.mxu0 %v251
  %350 = vmatprep.subr.mxu0 %v256
  %351 = vmatpush1.xpose.msra.mxu0 %v255
  %352 = vmatprep.subr.mxu0 %v260
  %353 = vmatpush1.xpose.msra.mxu0 %v259
  %354 = vmatprep.subr.mxu0 %v264
  %355 = vmatpush1.xpose.msra.mxu0 %v263
  %356 = vmatprep.subr.mxu0 0.0
  %357 = vmatpush1.xpose.msra.mxu0 0.0
  %358 = vmatprep.subr.mxu0 0.0
  %359 = vmatpush1.xpose.msra.mxu0 0.0
  %360 = vmatprep.subr.mxu0 0.0
  %361 = vmatpush1.xpose.msra.mxu0 0.0
  %362 = vmatprep.subr.mxu0 0.0
  %363 = vmatpush1.xpose.msra.mxu0 0.0
  %364 = vmatprep.subr.mxu0 0.0
  %365 = vmatpush1.xpose.msra.mxu0 0.0
  %366 = vmatprep.subr.mxu0 0.0
  %367 = vmatpush1.xpose.msra.mxu0 0.0
  %368 = vmatprep.subr.mxu0 0.0
  %369 = vmatpush1.xpose.msra.mxu0 0.0
  %370 = vmatprep.subr.mxu0 0.0
  %371 = vmatpush1.xpose.msra.mxu0 0.0
  %372 = vmatprep.subr.mxu0 0.0
  %373 = vmatpush1.xpose.msra.mxu0 0.0
  %374 = vmatprep.subr.mxu0 0.0
  %375 = vmatpush1.xpose.msra.mxu0 0.0
  %376 = vmatprep.subr.mxu0 0.0
  %377 = vmatpush1.xpose.msra.mxu0 0.0
  %378 = vmatprep.subr.mxu0 0.0
  %379 = vmatpush1.xpose.msra.mxu0 0.0
  %380 = vmatprep.subr.mxu0 0.0
  %381 = vmatpush1.xpose.msra.mxu0 0.0
  %382 = vmatprep.subr.mxu0 0.0
  %383 = vmatpush1.xpose.msra.mxu0 0.0
  %384 = vmatprep.subr.mxu0 0.0
  %385 = vmatpush1.xpose.msra.mxu0 0.0
  %386 = vmatprep.subr.mxu0 0.0
  %387 = vmatpush1.xpose.msra.mxu0 0.0
  %388 = vmatprep.subr.mxu0 0.0
  %389 = vmatpush1.xpose.msra.mxu0 0.0
  %390 = vmatprep.subr.mxu0 0.0
  %391 = vmatpush1.xpose.msra.mxu0 0.0
  %392 = vmatprep.subr.mxu0 0.0
  %393 = vmatpush1.xpose.msra.mxu0 0.0
  %394 = vmatprep.subr.mxu0 0.0
  %395 = vmatpush1.xpose.msra.mxu0 0.0
  %396 = vmatprep.subr.mxu0 0.0
  %397 = vmatpush1.xpose.msra.mxu0 0.0
  %398 = vmatprep.subr.mxu0 0.0
  %399 = vmatpush1.xpose.msra.mxu0 0.0
  %400 = vmatprep.subr.mxu0 0.0
  %401 = vmatpush1.xpose.msra.mxu0 0.0
  %402 = vmatprep.subr.mxu0 0.0
  %403 = vmatpush1.xpose.msra.mxu0 0.0
  %404 = vmatprep.subr.mxu0 0.0
  %405 = vmatpush1.xpose.msra.mxu0 0.0
  %406 = vmatprep.subr.mxu0 0.0
  %407 = vmatpush1.xpose.msra.mxu0 0.0
  %408 = vmatprep.subr.mxu0 0.0
  %409 = vmatpush1.xpose.msra.mxu0 0.0
  %410 = vmatprep.subr.mxu0 0.0
  %411 = vmatpush1.xpose.msra.mxu0 0.0
  %412 = vmatprep.mubr.f32.mxu0 %v268
  %413 = vmatmul.mubr.f32.gmra.mrb[0].mxu0 %v267
  %v414 = vpop.f32.mrb[0].mxu0
  %v415 = vadd.f32 %v340, %v414
  %v416 = vpop.f32.mrb[0].mxu0
  %417 = vmatprep.mubr.f32.mxu0 %v272
  %418 = vmatmul.mubr.f32.gmra.mrb[0].mxu0 %v271
  %v419 = vpop.f32.mrb[0].mxu0
  %v420 = vadd.f32 %v345, %v419
  %v421 = vpop.f32.mrb[0].mxu0
  %422 = vdwg.mxu0
  %v423 = vld [vmem:[%s3] sm:$0xff]
  %v424 = vld [vmem:[%s3 + $0x8] sm:$0xff]
  %v425 = vld [vmem:[%s3 + $0x10] sm:$0xff]
  %v426 = vld [vmem:[%s3 + $0x18] sm:$0xff]
  %v427 = vld [vmem:[%s3 + $0x20] sm:$0x1]
  %v428 = vld [vmem:[%s3 + $0x28] sm:$0xff]
  %v429 = vld [vmem:[%s3 + $0x30] sm:$0xff]
  %v430 = vld [vmem:[%s3 + $0x38] sm:$0xff]
  %v431 = vld [vmem:[%s3 + $0x40] sm:$0xff]
  %v432 = vld [vmem:[%s3 + $0x48] sm:$0x1]
  %v433 = vadd.f32 %v17, %v19
  %v434 = vadd.f32 %v18, %v20
  %v435 = vmul.f32 %v433, %v415
  %v436 = vmul.f32 %v434, %v420
  %v437 = vlaneseq
  %v438 = vshrl.u32 %v437, 7
  %v439 = vsub.s32 0, %v438
  %v440 = vrot.slane %v427, %v439
  %vm441 = vcmask 261120
  %v443 = vsel %vm441, %v435, 0
  %v446 = vsel %vm441, %v436, 0
  %448 = vmatprep.subr.mxu0 0.0
  %449 = vmatpush1.msra.mxu0 %v423
  %450 = vmatprep.subr.mxu0 0.0
  %451 = vmatpush1.msra.mxu0 %v424
  %452 = vmatprep.subr.mxu0 0.0
  %453 = vmatpush1.msra.mxu0 %v425
  %454 = vmatprep.subr.mxu0 0.0
  %455 = vmatpush1.msra.mxu0 %v426
  %456 = vmatprep.subr.mxu0 0.0
  %457 = vmatpush1.msra.mxu0 0.0
  %458 = vmatprep.subr.mxu0 0.0
  %459 = vmatpush1.msra.mxu0 0.0
  %460 = vmatprep.subr.mxu0 0.0
  %461 = vmatpush1.msra.mxu0 0.0
  %462 = vmatprep.subr.mxu0 0.0
  %463 = vmatpush1.msra.mxu0 0.0
  %464 = vmatprep.subr.mxu0 0.0
  %465 = vmatpush1.msra.mxu0 0.0
  %466 = vmatprep.subr.mxu0 0.0
  %467 = vmatpush1.msra.mxu0 0.0
  %468 = vmatprep.subr.mxu0 0.0
  %469 = vmatpush1.msra.mxu0 0.0
  %470 = vmatprep.subr.mxu0 0.0
  %471 = vmatpush1.msra.mxu0 0.0
  %472 = vmatprep.subr.mxu0 0.0
  %473 = vmatpush1.msra.mxu0 0.0
  %474 = vmatprep.subr.mxu0 0.0
  %475 = vmatpush1.msra.mxu0 0.0
  %476 = vmatprep.subr.mxu0 0.0
  %477 = vmatpush1.msra.mxu0 0.0
  %478 = vmatprep.subr.mxu0 0.0
  %479 = vmatpush1.msra.mxu0 0.0
  %480 = vmatprep.subr.mxu0 0.0
  %481 = vmatpush1.msra.mxu0 0.0
  %482 = vmatprep.subr.mxu0 0.0
  %483 = vmatpush1.msra.mxu0 0.0
  %484 = vmatprep.subr.mxu0 0.0
  %485 = vmatpush1.msra.mxu0 0.0
  %486 = vmatprep.subr.mxu0 0.0
  %487 = vmatpush1.msra.mxu0 0.0
  %488 = vmatprep.subr.mxu0 0.0
  %489 = vmatpush1.msra.mxu0 0.0
  %490 = vmatprep.subr.mxu0 0.0
  %491 = vmatpush1.msra.mxu0 0.0
  %492 = vmatprep.subr.mxu0 0.0
  %493 = vmatpush1.msra.mxu0 0.0
  %494 = vmatprep.subr.mxu0 0.0
  %495 = vmatpush1.msra.mxu0 0.0
  %496 = vmatprep.subr.mxu0 0.0
  %497 = vmatpush1.msra.mxu0 0.0
  %498 = vmatprep.subr.mxu0 0.0
  %499 = vmatpush1.msra.mxu0 0.0
  %500 = vmatprep.subr.mxu0 0.0
  %501 = vmatpush1.msra.mxu0 0.0
  %502 = vmatprep.subr.mxu0 0.0
  %503 = vmatpush1.msra.mxu0 0.0
  %504 = vmatprep.subr.mxu0 0.0
  %505 = vmatpush1.msra.mxu0 0.0
  %506 = vmatprep.subr.mxu0 0.0
  %507 = vmatpush1.msra.mxu0 0.0
  %508 = vmatprep.subr.mxu0 0.0
  %509 = vmatpush1.msra.mxu0 0.0
  %510 = vmatprep.subr.mxu0 0.0
  %511 = vmatpush1.msra.mxu0 0.0
  %512 = vmatprep.mubr.f32.mxu0 0.0
  %513 = vmatmul.mubr.f32.gmra.mrb[0].mxu0 %v443
  %v514 = vpop.f32.mrb[0].mxu0
  %v515 = vadd.f32 %v440, %v514
  %v516 = vpop.f32.mrb[0].mxu0
  %517 = vmatprep.mubr.f32.mxu0 0.0
  %518 = vmatmul.mubr.f32.gmra.mrb[0].mxu0 %v446
  %v519 = vpop.f32.mrb[0].mxu0
  %v520 = vadd.f32 %v440, %v519
  %v521 = vpop.f32.mrb[0].mxu0
  %522 = vdwg.mxu0
  %v523 = vmax.f32 %v515, 0.0
  %v524 = vmax.f32 %v520, 0.0
  %529 = vrot.lane.b32.xlu0 %v423, 96
  %v530 = vpop.permute.xlu0 %529
  %531 = vrot.lane.b32.xlu0 %v424, 96
  %v532 = vpop.permute.xlu0 %531
  %533 = vrot.lane.b32.xlu0 %v425, 96
  %v534 = vpop.permute.xlu0 %533
  %535 = vrot.lane.b32.xlu0 %v426, 96
  %v536 = vpop.permute.xlu0 %535
  %542 = vrot.lane.b32.xlu0 %v440, 96
  %v543 = vpop.permute.xlu0 %542
  %v546 = vsel %vm441, %v523, 0
  %v549 = vsel %vm441, %v524, 0
  %551 = vmatprep.subr.mxu0 0.0
  %552 = vmatpush1.msra.mxu0 %v530
  %553 = vmatprep.subr.mxu0 0.0
  %554 = vmatpush1.msra.mxu0 %v532
  %555 = vmatprep.subr.mxu0 0.0
  %556 = vmatpush1.msra.mxu0 %v534
  %557 = vmatprep.subr.mxu0 0.0
  %558 = vmatpush1.msra.mxu0 %v536
  %559 = vmatprep.subr.mxu0 0.0
  %560 = vmatpush1.msra.mxu0 0.0
  %561 = vmatprep.subr.mxu0 0.0
  %562 = vmatpush1.msra.mxu0 0.0
  %563 = vmatprep.subr.mxu0 0.0
  %564 = vmatpush1.msra.mxu0 0.0
  %565 = vmatprep.subr.mxu0 0.0
  %566 = vmatpush1.msra.mxu0 0.0
  %567 = vmatprep.subr.mxu0 0.0
  %568 = vmatpush1.msra.mxu0 0.0
  %569 = vmatprep.subr.mxu0 0.0
  %570 = vmatpush1.msra.mxu0 0.0
  %571 = vmatprep.subr.mxu0 0.0
  %572 = vmatpush1.msra.mxu0 0.0
  %573 = vmatprep.subr.mxu0 0.0
  %574 = vmatpush1.msra.mxu0 0.0
  %575 = vmatprep.subr.mxu0 0.0
  %576 = vmatpush1.msra.mxu0 0.0
  %577 = vmatprep.subr.mxu0 0.0
  %578 = vmatpush1.msra.mxu0 0.0
  %579 = vmatprep.subr.mxu0 0.0
  %580 = vmatpush1.msra.mxu0 0.0
  %581 = vmatprep.subr.mxu0 0.0
  %582 = vmatpush1.msra.mxu0 0.0
  %583 = vmatprep.subr.mxu0 0.0
  %584 = vmatpush1.msra.mxu0 0.0
  %585 = vmatprep.subr.mxu0 0.0
  %586 = vmatpush1.msra.mxu0 0.0
  %587 = vmatprep.subr.mxu0 0.0
  %588 = vmatpush1.msra.mxu0 0.0
  %589 = vmatprep.subr.mxu0 0.0
  %590 = vmatpush1.msra.mxu0 0.0
  %591 = vmatprep.subr.mxu0 0.0
  %592 = vmatpush1.msra.mxu0 0.0
  %593 = vmatprep.subr.mxu0 0.0
  %594 = vmatpush1.msra.mxu0 0.0
  %595 = vmatprep.subr.mxu0 0.0
  %596 = vmatpush1.msra.mxu0 0.0
  %597 = vmatprep.subr.mxu0 0.0
  %598 = vmatpush1.msra.mxu0 0.0
  %599 = vmatprep.subr.mxu0 0.0
  %600 = vmatpush1.msra.mxu0 0.0
  %601 = vmatprep.subr.mxu0 0.0
  %602 = vmatpush1.msra.mxu0 0.0
  %603 = vmatprep.subr.mxu0 0.0
  %604 = vmatpush1.msra.mxu0 0.0
  %605 = vmatprep.subr.mxu0 0.0
  %606 = vmatpush1.msra.mxu0 0.0
  %607 = vmatprep.subr.mxu0 0.0
  %608 = vmatpush1.msra.mxu0 0.0
  %609 = vmatprep.subr.mxu0 0.0
  %610 = vmatpush1.msra.mxu0 0.0
  %611 = vmatprep.subr.mxu0 0.0
  %612 = vmatpush1.msra.mxu0 0.0
  %613 = vmatprep.subr.mxu0 0.0
  %614 = vmatpush1.msra.mxu0 0.0
  %615 = vmatprep.mubr.f32.mxu0 0.0
  %616 = vmatmul.mubr.f32.gmra.mrb[0].mxu0 %v546
  %v617 = vpop.f32.mrb[0].mxu0
  %v618 = vadd.f32 %v543, %v617
  %v619 = vpop.f32.mrb[0].mxu0
  %620 = vmatprep.mubr.f32.mxu0 0.0
  %621 = vmatmul.mubr.f32.gmra.mrb[0].mxu0 %v549
  %v622 = vpop.f32.mrb[0].mxu0
  %v623 = vadd.f32 %v543, %v622
  %v624 = vpop.f32.mrb[0].mxu0
  %625 = vdwg.mxu0
  %628 = vrot.lane.b32.xlu0 %v618, 124
  %v629 = vpop.permute.xlu0 %628
  %630 = vrot.lane.b32.xlu0 %v623, 124
  %v631 = vpop.permute.xlu0 %630
  %v634 = vadd.f32 %v21, %v629
  %v635 = vadd.f32 %v22, %v631
  %v636 = vadd.f32 %v523, %v19
  %v637 = vadd.f32 %v524, %v20
  %v638 = vmul.f32 %v636, %v415
  %v639 = vmul.f32 %v637, %v420
  %v640 = vlaneseq
  %v641 = vshrl.u32 %v640, 7
  %v642 = vsub.s32 0, %v641
  %v643 = vrot.slane %v432, %v642
  %v645 = vsel %vm441, %v638, 0
  %v648 = vsel %vm441, %v639, 0
  %650 = vmatprep.subr.mxu0 0.0
  %651 = vmatpush1.msra.mxu0 %v428
  %652 = vmatprep.subr.mxu0 0.0
  %653 = vmatpush1.msra.mxu0 %v429
  %654 = vmatprep.subr.mxu0 0.0
  %655 = vmatpush1.msra.mxu0 %v430
  %656 = vmatprep.subr.mxu0 0.0
  %657 = vmatpush1.msra.mxu0 %v431
  %658 = vmatprep.subr.mxu0 0.0
  %659 = vmatpush1.msra.mxu0 0.0
  %660 = vmatprep.subr.mxu0 0.0
  %661 = vmatpush1.msra.mxu0 0.0
  %662 = vmatprep.subr.mxu0 0.0
  %663 = vmatpush1.msra.mxu0 0.0
  %664 = vmatprep.subr.mxu0 0.0
  %665 = vmatpush1.msra.mxu0 0.0
  %666 = vmatprep.subr.mxu0 0.0
  %667 = vmatpush1.msra.mxu0 0.0
  %668 = vmatprep.subr.mxu0 0.0
  %669 = vmatpush1.msra.mxu0 0.0
  %670 = vmatprep.subr.mxu0 0.0
  %671 = vmatpush1.msra.mxu0 0.0
  %672 = vmatprep.subr.mxu0 0.0
  %673 = vmatpush1.msra.mxu0 0.0
  %674 = vmatprep.subr.mxu0 0.0
  %675 = vmatpush1.msra.mxu0 0.0
  %676 = vmatprep.subr.mxu0 0.0
  %677 = vmatpush1.msra.mxu0 0.0
  %678 = vmatprep.subr.mxu0 0.0
  %679 = vmatpush1.msra.mxu0 0.0
  %680 = vmatprep.subr.mxu0 0.0
  %681 = vmatpush1.msra.mxu0 0.0
  %682 = vmatprep.subr.mxu0 0.0
  %683 = vmatpush1.msra.mxu0 0.0
  %684 = vmatprep.subr.mxu0 0.0
  %685 = vmatpush1.msra.mxu0 0.0
  %686 = vmatprep.subr.mxu0 0.0
  %687 = vmatpush1.msra.mxu0 0.0
  %688 = vmatprep.subr.mxu0 0.0
  %689 = vmatpush1.msra.mxu0 0.0
  %690 = vmatprep.subr.mxu0 0.0
  %691 = vmatpush1.msra.mxu0 0.0
  %692 = vmatprep.subr.mxu0 0.0
  %693 = vmatpush1.msra.mxu0 0.0
  %694 = vmatprep.subr.mxu0 0.0
  %695 = vmatpush1.msra.mxu0 0.0
  %696 = vmatprep.subr.mxu0 0.0
  %697 = vmatpush1.msra.mxu0 0.0
  %698 = vmatprep.subr.mxu0 0.0
  %699 = vmatpush1.msra.mxu0 0.0
  %700 = vmatprep.subr.mxu0 0.0
  %701 = vmatpush1.msra.mxu0 0.0
  %702 = vmatprep.subr.mxu0 0.0
  %703 = vmatpush1.msra.mxu0 0.0
  %704 = vmatprep.subr.mxu0 0.0
  %705 = vmatpush1.msra.mxu0 0.0
  %706 = vmatprep.subr.mxu0 0.0
  %707 = vmatpush1.msra.mxu0 0.0
  %708 = vmatprep.subr.mxu0 0.0
  %709 = vmatpush1.msra.mxu0 0.0
  %710 = vmatprep.subr.mxu0 0.0
  %711 = vmatpush1.msra.mxu0 0.0
  %712 = vmatprep.subr.mxu0 0.0
  %713 = vmatpush1.msra.mxu0 0.0
  %714 = vmatprep.mubr.f32.mxu0 0.0
  %715 = vmatmul.mubr.f32.gmra.mrb[0].mxu0 %v645
  %v716 = vpop.f32.mrb[0].mxu0
  %v717 = vadd.f32 %v643, %v716
  %v718 = vpop.f32.mrb[0].mxu0
  %719 = vmatprep.mubr.f32.mxu0 0.0
  %720 = vmatmul.mubr.f32.gmra.mrb[0].mxu0 %v648
  %v721 = vpop.f32.mrb[0].mxu0
  %v722 = vadd.f32 %v643, %v721
  %v723 = vpop.f32.mrb[0].mxu0
  %724 = vdwg.mxu0
  %v725 = vmax.f32 %v717, 0.0
  %v726 = vmax.f32 %v722, 0.0
  %731 = vrot.lane.b32.xlu0 %v428, 96
  %v732 = vpop.permute.xlu0 %731
  %733 = vrot.lane.b32.xlu0 %v429, 96
  %v734 = vpop.permute.xlu0 %733
  %735 = vrot.lane.b32.xlu0 %v430, 96
  %v736 = vpop.permute.xlu0 %735
  %737 = vrot.lane.b32.xlu0 %v431, 96
  %v738 = vpop.permute.xlu0 %737
  %744 = vrot.lane.b32.xlu0 %v643, 96
  %v745 = vpop.permute.xlu0 %744
  %v748 = vsel %vm441, %v725, 0
  %v751 = vsel %vm441, %v726, 0
  %753 = vmatprep.subr.mxu0 0.0
  %754 = vmatpush1.msra.mxu0 %v732
  %755 = vmatprep.subr.mxu0 0.0
  %756 = vmatpush1.msra.mxu0 %v734
  %757 = vmatprep.subr.mxu0 0.0
  %758 = vmatpush1.msra.mxu0 %v736
  %759 = vmatprep.subr.mxu0 0.0
  %760 = vmatpush1.msra.mxu0 %v738
  %761 = vmatprep.subr.mxu0 0.0
  %762 = vmatpush1.msra.mxu0 0.0
  %763 = vmatprep.subr.mxu0 0.0
  %764 = vmatpush1.msra.mxu0 0.0
  %765 = vmatprep.subr.mxu0 0.0
  %766 = vmatpush1.msra.mxu0 0.0
  %767 = vmatprep.subr.mxu0 0.0
  %768 = vmatpush1.msra.mxu0 0.0
  %769 = vmatprep.subr.mxu0 0.0
  %770 = vmatpush1.msra.mxu0 0.0
  %771 = vmatprep.subr.mxu0 0.0
  %772 = vmatpush1.msra.mxu0 0.0
  %773 = vmatprep.subr.mxu0 0.0
  %774 = vmatpush1.msra.mxu0 0.0
  %775 = vmatprep.subr.mxu0 0.0
  %776 = vmatpush1.msra.mxu0 0.0
  %777 = vmatprep.subr.mxu0 0.0
  %778 = vmatpush1.msra.mxu0 0.0
  %779 = vmatprep.subr.mxu0 0.0
  %780 = vmatpush1.msra.mxu0 0.0
  %781 = vmatprep.subr.mxu0 0.0
  %782 = vmatpush1.msra.mxu0 0.0
  %783 = vmatprep.subr.mxu0 0.0
  %784 = vmatpush1.msra.mxu0 0.0
  %785 = vmatprep.subr.mxu0 0.0
  %786 = vmatpush1.msra.mxu0 0.0
  %787 = vmatprep.subr.mxu0 0.0
  %788 = vmatpush1.msra.mxu0 0.0
  %789 = vmatprep.subr.mxu0 0.0
  %790 = vmatpush1.msra.mxu0 0.0
  %791 = vmatprep.subr.mxu0 0.0
  %792 = vmatpush1.msra.mxu0 0.0
  %793 = vmatprep.subr.mxu0 0.0
  %794 = vmatpush1.msra.mxu0 0.0
  %795 = vmatprep.subr.mxu0 0.0
  %796 = vmatpush1.msra.mxu0 0.0
  %797 = vmatprep.subr.mxu0 0.0
  %798 = vmatpush1.msra.mxu0 0.0
  %799 = vmatprep.subr.mxu0 0.0
  %800 = vmatpush1.msra.mxu0 0.0
  %801 = vmatprep.subr.mxu0 0.0
  %802 = vmatpush1.msra.mxu0 0.0
  %803 = vmatprep.subr.mxu0 0.0
  %804 = vmatpush1.msra.mxu0 0.0
  %805 = vmatprep.subr.mxu0 0.0
  %806 = vmatpush1.msra.mxu0 0.0
  %807 = vmatprep.subr.mxu0 0.0
  %808 = vmatpush1.msra.mxu0 0.0
  %809 = vmatprep.subr.mxu0 0.0
  %810 = vmatpush1.msra.mxu0 0.0
  %811 = vmatprep.subr.mxu0 0.0
  %812 = vmatpush1.msra.mxu0 0.0
  %813 = vmatprep.subr.mxu0 0.0
  %814 = vmatpush1.msra.mxu0 0.0
  %815 = vmatprep.subr.mxu0 0.0
  %816 = vmatpush1.msra.mxu0 0.0
  %817 = vmatprep.mubr.f32.mxu0 0.0
  %818 = vmatmul.mubr.f32.gmra.mrb[0].mxu0 %v748
  %v819 = vpop.f32.mrb[0].mxu0
  %v820 = vadd.f32 %v745, %v819
  %v821 = vpop.f32.mrb[0].mxu0
  %822 = vmatprep.mubr.f32.mxu0 0.0
  %823 = vmatmul.mubr.f32.gmra.mrb[0].mxu0 %v751
  %v824 = vpop.f32.mrb[0].mxu0
  %v825 = vadd.f32 %v745, %v824
  %v826 = vpop.f32.mrb[0].mxu0
  %827 = vdwg.mxu0
  %830 = vrot.lane.b32.xlu0 %v820, 124
  %v831 = vpop.permute.xlu0 %830
  %832 = vrot.lane.b32.xlu0 %v825, 124
  %v833 = vpop.permute.xlu0 %832
  %v836 = vadd.f32 %v634, %v831
  %v837 = vadd.f32 %v635, %v833
  %v838 = vxor.u32 %v820, 2147483648
  %v839 = vxor.u32 %v825, 2147483648
  %v840 = vmul.f32 %v838, 1.442695
  %v841 = vpow.pop %v840
  %v842 = vmul.f32 %v839, 1.442695
  %v843 = vpow.pop %v842
  %v844 = vadd.f32 %v841, 1.0
  %v845 = vadd.f32 %v843, 1.0
  %v846 = vrcp.pop %v844
  %v847 = vmul.f32 1.0, %v846
  %v848 = vrcp.pop %v845
  %v849 = vmul.f32 1.0, %v848
  %852 = vrot.lane.b32.xlu0 %v836, 8
  %v853 = vpop.permute.xlu0 %852
  %854 = vrot.lane.b32.xlu0 %v837, 8
  %v855 = vpop.permute.xlu0 %854
  %860 = vrot.lane.b32.xlu0 %v847, 16
  %v861 = vpop.permute.xlu0 %860
  %862 = vrot.lane.b32.xlu0 %v849, 16
  %v863 = vpop.permute.xlu0 %862
  %vm866 = vcmask 31744
  %v867 = vsel %vm866, %v820, 0.0
  %v868 = vsel %vm866, %v825, 0.0
  %vm869 = vcmask 64512
  %v870 = vsel %vm869, %v867, %v853
  %v871 = vsel %vm869, %v868, %v855
  %vm872 = vcmask 105472
  %v873 = vsel %vm872, %v870, 0.0
  %v874 = vsel %vm872, %v871, 0.0
  %vm875 = vcmask 130048
  %v876 = vsel %vm875, %v873, %v861
  %v877 = vsel %vm875, %v874, %v863
  %vm878 = vcmask 162816
  %v879 = vsel %vm878, %v876, 0.0
  %v880 = vsel %vm878, %v877, 0.0
  %881 = vst [vmem:[%s4] sm:$0xff] %v879
  %882 = vst [vmem:[%s4 + $0x8] sm:$0xff] %v880
  // Predicated region
  $region18: #{rsparse_rcnn_forward.1} parent=0 // pred_check
    _
  $region19: #{rsparse_rcnn_forward.1} parent=0 // pred_check_branch
    %884 = sbr.rel (0) target = $region21
  $region20: #{rsparse_rcnn_forward.1} parent=0 // pred_region
    _
  $region21: #{rsparse_rcnn_forward.1} parent=0 // pred_fallthru
    _
  // Predicated region
  $region22: #{rsparse_rcnn_forward.1} parent=0 // pred_check
    _
  $region23: #{rsparse_rcnn_forward.1} parent=0 // pred_check_branch
    %886 = sbr.rel (0) target = $region25
  $region24: #{rsparse_rcnn_forward.1} parent=0 // pred_region
    _
  $region25: #{rsparse_rcnn_forward.1} parent=0 // pred_fallthru
    _

</llo_original>
